<compile_context>
chip_gen: v5e
topology: v5e:2x2
jax: 0.10.0
libtpu: 0.0.40
codegen_flags: <defaults>
</compile_context>

<pallas_src>
import functools

import jax
import jax.numpy as jnp
from jax import lax
from jax.experimental import pallas as pl
from jax.experimental.pallas import tpu as pltpu


# ---------------------------------------------------------------------------
# Kernels
# ---------------------------------------------------------------------------
def _swin_loss_kernel_acc(x_ref, w_ref, o_ref, acc_ref):
    """One (tm, tn) output tile; K-reduction runs over grid axis 2.

    x tile: (tm, tk); w tile: (tn, tk) -> contract on the last dim of both.
    """
    @pl.when(pl.program_id(2) == 0)
    def _():
        acc_ref[...] = jnp.zeros_like(acc_ref)

    acc_ref[...] += lax.dot_general(
        x_ref[...],
        w_ref[...],
        dimension_numbers=(((1,), (1,)), ((), ())),
        preferred_element_type=jnp.float32,
    )

    @pl.when(pl.program_id(2) == pl.num_programs(2) - 1)
    def _():
        o_ref[...] = acc_ref[...].astype(o_ref.dtype)


def _swin_loss_kernel_single_k(x_ref, w_ref, o_ref):
    """Fast path when the whole K dimension fits in one block: no scratch."""
    o_ref[...] = lax.dot_general(
        x_ref[...],
        w_ref[...],
        dimension_numbers=(((1,), (1,)), ((), ())),
        preferred_element_type=jnp.float32,
    ).astype(o_ref.dtype)


# ---------------------------------------------------------------------------
# Tiling helpers
# ---------------------------------------------------------------------------
def _round_up(x, m):
    return ((x + m - 1) // m) * m


def _snap_tile(dim_rounded, tile):
    """Largest multiple of 128 <= tile that divides dim_rounded (mult of 128)."""
    t = min(tile, dim_rounded)
    t = max(128, (t // 128) * 128)
    while t > 128 and dim_rounded % t:
        t -= 128
    return t


def _tpu_tuning():
    """(tm, tn, tk, vmem_limit_bytes) chosen per TPU generation."""
    try:
        vmem_bytes = int(pltpu.get_tpu_info().vmem_capacity_bytes)
    except Exception:
        # Conservative fallback: assume the smallest per-TC VMEM (v7x).
        vmem_bytes = 64 * 1024 * 1024
    # ~18% headroom for compiler internal scratch / semaphores.
    vmem_limit = int(vmem_bytes * 0.82)
    if vmem_bytes <= 80 * 1024 * 1024:
        # v7x: 64 MiB per TC.  ~26 MiB footprint
        # (8 MiB fp32 acc + 8 MiB double-buffered out + ~6 MiB operands).
        tm, tn, tk = 2048, 1024, 512
    else:
        # v5e / v6e: 128 MiB.  ~40 MiB footprint, arith intensity 1024 f/B.
        tm, tn, tk = 2048, 2048, 512
    return tm, tn, tk, vmem_limit


# ---------------------------------------------------------------------------
# Wrapper
# ---------------------------------------------------------------------------
@functools.partial(
    jax.jit, static_argnames=("tm", "tn", "tk", "compute_dtype")
)
def swin_loss_forward(
    hidden_states,
    weight,
    *,
    tm=None,
    tn=None,
    tk=None,
    compute_dtype=jnp.bfloat16,
):
    """logits = hidden_states @ weight.T  (no bias).

    hidden_states: [B, S, H]
    weight:        [num_classes, H]
    returns:       [B, S, num_classes]  (same dtype as hidden_states)

    Note: compute_dtype=bf16 (default) feeds the fast MXU path with fp32
    accumulation; pass compute_dtype=None to keep fp32 operands (slower,
    matches the fp32 PyTorch reference bit-for-bit more closely).
    """
    B, S, H = hidden_states.shape
    N, K = weight.shape
    assert K == H, "weight hidden dim must match hidden_states"

    out_dtype = hidden_states.dtype
    M = B * S
    x2d = hidden_states.reshape(M, K)

    # Generation-aware defaults (user overrides win).
    d_tm, d_tn, d_tk, vmem_limit = _tpu_tuning()
    tm = d_tm if tm is None else tm
    tn = d_tn if tn is None else tn
    tk = d_tk if tk is None else tk

    # Cast only if needed (store the weight pre-cast in bf16 to skip this
    # full HBM pass over the classifier weight on every call).
    if compute_dtype is not None:
        if x2d.dtype != compute_dtype:
            x2d = x2d.astype(compute_dtype)
        w = weight if weight.dtype == compute_dtype else weight.astype(compute_dtype)
    else:
        w = weight

    # 128-rounded problem dims.
    Mr = _round_up(M, 128)
    Nr = _round_up(N, 128)
    Kr = _round_up(K, 128)

    # tm: clamp only (keep it as large as possible -> fewer full passes over
    # the vocab weight; the resulting activation-side M pad is cheap).
    tm = min(max(tm, 128), Mr)
    # tn/tk: snap to divisors of the rounded dims so the weight pad is a
    # no-op for typical (multiple-of-128) vocab / hidden sizes.
    tn = _snap_tile(Nr, tn)
    tk = _snap_tile(Kr, tk)

    # v7x megacore balance: if all of M fits in one tile, keep >= 2 tiles on
    # the j "parallel" axis (when N allows) so both TensorCores get work.
    if Mr <= tm and Nr // tn < 2 and Nr >= 256:
        tn = _snap_tile(Nr, max(128, Nr // 2))

    # Zero-pad to tile multiples (zeros are exact for the K reduction; padded
    # M/N rows & cols are sliced away afterwards).
    Mp, Np, Kp = _round_up(M, tm), _round_up(N, tn), _round_up(K, tk)
    if (Mp, Kp) != (M, K):
        x2d = jnp.pad(x2d, ((0, Mp - M), (0, Kp - K)))
    if (Np, Kp) != (N, K):
        w = jnp.pad(w, ((0, Np - N), (0, Kp - K)))

    gm, gn, gk = Mp // tm, Np // tn, Kp // tk

    # Advisory cost estimate (actual streamed bytes incl. re-streaming).
    x_bytes = x2d.dtype.itemsize
    w_bytes = w.dtype.itemsize
    o_bytes = jnp.dtype(out_dtype).itemsize
    cost = pl.CostEstimate(
        flops=2 * Mp * Np * Kp,
        bytes_accessed=(gn * Mp * Kp * x_bytes
                        + gm * Np * Kp * w_bytes
                        + Mp * Np * o_bytes),
        transcendentals=0,
    )

    if gk == 1:
        # Single K block: no fp32 accumulator scratch / zero-init / += .
        kernel = _swin_loss_kernel_single_k
        grid = (gm, gn)
        in_specs = [
            pl.BlockSpec((tm, tk), lambda i, j: (i, 0)),
            pl.BlockSpec((tn, tk), lambda i, j: (j, 0)),
        ]
        out_spec = pl.BlockSpec((tm, tn), lambda i, j: (i, j))
        scratch_shapes = []
        dim_sem = ("parallel", "parallel")
    else:
        kernel = _swin_loss_kernel_acc
        grid = (gm, gn, gk)
        in_specs = [
            pl.BlockSpec((tm, tk), lambda i, j, k: (i, k)),
            # weight stays [N, K] — no wrapper transpose, lane-dense K.
            pl.BlockSpec((tn, tk), lambda i, j, k: (j, k)),
        ]
        out_spec = pl.BlockSpec((tm, tn), lambda i, j, k: (i, j))
        scratch_shapes = [pltpu.VMEM((tm, tn), jnp.float32)]
        dim_sem = ("parallel", "parallel", "arbitrary")

    out2d = pl.pallas_call(
        kernel,
        out_shape=jax.ShapeDtypeStruct((Mp, Np), out_dtype),
        grid_spec=pltpu.PrefetchScalarGridSpec(
            num_scalar_prefetch=0,
            grid=grid,
            in_specs=in_specs,
            out_specs=out_spec,
            scratch_shapes=scratch_shapes,
        ),
        compiler_params=pltpu.CompilerParams(
            dimension_semantics=dim_sem,
            vmem_limit_bytes=vmem_limit,
        ),
        cost_estimate=cost,
    )(x2d, w)

    if (Mp, Np) != (M, N):
        out2d = out2d[:M, :N]
    return out2d.reshape(B, S, N)


# ---------------------------------------------------------------------------
# Self-test
# ---------------------------------------------------------------------------
if __name__ == "__main__":
    # Small shapes consistent with the module's forward:
    # hidden_states [B, S, H], weight (classifier) [num_classes, H].
    B, S, H, NUM_CLASSES = 2, 8, 32, 16

    key = jax.random.PRNGKey(0)
    k_x, k_w = jax.random.split(key)

    hidden_states = jax.random.normal(k_x, (B, S, H), dtype=jnp.float32)
    # Deterministic parameter init (synthetic, not a checkpoint load).
    weight = jax.random.normal(k_w, (NUM_CLASSES, H), dtype=jnp.float32) * 0.02

    # TODO(synk): tensor-parallel async all-reduce / sequence-parallel
    # gather-scatter of the Megatron wrapper is a multi-device collective;
    # single-device semantics (world_size == 1) reduce exactly to the
    # bias-free matmul implemented here.

    logits = swin_loss_forward(hidden_states, weight)
    jax.block_until_ready(logits)
    assert logits.shape == (B, S, NUM_CLASSES)
    assert logits.dtype == hidden_states.dtype

    # Correctness check vs a JAX reference using the same bf16-operand /
    # fp32-accumulate contraction.
    ref = jnp.einsum(
        "bsh,nh->bsn",
        hidden_states.astype(jnp.bfloat16),
        weight.astype(jnp.bfloat16),
        preferred_element_type=jnp.float32,
    ).astype(jnp.float32)
    assert jnp.allclose(logits, ref, atol=1e-4, rtol=1e-4)

    # Loose sanity check against the full-fp32 math as well.
    ref_fp32 = jnp.einsum("bsh,nh->bsn", hidden_states, weight)
    assert jnp.allclose(logits, ref_fp32, atol=3e-2, rtol=3e-2)

    print("KERNEL_OK")
</pallas_src>

<mosaic_0001>
module attributes {stable_mosaic.version = 11 : i64} {
  func.func @_swin_loss_kernel_single_k(%arg0: i32, %arg1: i32, %arg2: memref<128x128xbf16, #tpu.memory_space<vmem>>, %arg3: memref<128x128xbf16, #tpu.memory_space<vmem>>, %arg4: memref<128x128xf32, #tpu.memory_space<vmem>>) attributes {dimension_semantics = [#tpu.dimension_semantics<parallel>, #tpu.dimension_semantics<parallel>], iteration_bounds = array<i64: 1, 1>, scalar_prefetch = 0 : i64, scratch_operands = 0 : i64, tpu.core_type = #tpu.core_type<tc>, window_params = [{transform_indices = @transform_0, window_bounds = array<i64: 128, 128>}, {transform_indices = @transform_1, window_bounds = array<i64: 128, 128>}, {transform_indices = @transform_2, window_bounds = array<i64: 128, 128>}]} {
    %c0 = arith.constant 0 : index
    %c0_0 = arith.constant 0 : index
    %0 = vector.load %arg2[%c0, %c0_0] : memref<128x128xbf16, #tpu.memory_space<vmem>>, vector<128x128xbf16>
    %c0_1 = arith.constant 0 : index
    %c0_2 = arith.constant 0 : index
    %1 = vector.load %arg3[%c0_1, %c0_2] : memref<128x128xbf16, #tpu.memory_space<vmem>>, vector<128x128xbf16>
    %cst = arith.constant dense<0.000000e+00> : vector<128x128xf32>
    %2 = tpu.matmul %0, %1, %cst {dimension_numbers = #tpu.dot_dimension_numbers<[1], [1], [0], [0], [0, 0, 1, 0], [], []>} : vector<128x128xbf16>, vector<128x128xbf16>, vector<128x128xf32> -> vector<128x128xf32>
    %c0_3 = arith.constant 0 : index
    %c0_4 = arith.constant 0 : index
    %3 = vector.load %arg4[%c0_3, %c0_4] : memref<128x128xf32, #tpu.memory_space<vmem>>, vector<128x128xf32>
    tpu.vector_store %arg4[%c0_3, %c0_4], %2 {strides = array<i32>} : memref<128x128xf32, #tpu.memory_space<vmem>>, vector<128x128xf32>,
    return
  }
  func.func @transform_0(%arg0: i32, %arg1: i32) -> (i32, i32) {
    %c0_i32 = arith.constant 0 : i32
    %c0_i32_0 = arith.constant 0 : i32
    return %arg0, %c0_i32 : i32, i32
  }
  func.func @transform_1(%arg0: i32, %arg1: i32) -> (i32, i32) {
    %c0_i32 = arith.constant 0 : i32
    %c0_i32_0 = arith.constant 0 : i32
    return %arg1, %c0_i32 : i32, i32
  }
  func.func @transform_2(%arg0: i32, %arg1: i32) -> (i32, i32) {
    %c0_i32 = arith.constant 0 : i32
    return %arg0, %arg1 : i32, i32
  }
}

</mosaic_0001>

<llo_original>
// kernel: swin_loss_forward.1
$region0: #{swin_loss_forward.1}
  #allocation0 [shape = 'u32[]', space=smem, size = 0x4, offset = 0x4, fixed_abs, tag = 'smem constant byte address 0x4 - core index']
  #allocation1 [shape = 'u32[72,128]{1,0:T(1,128)}', space=vmem, size = 0x9000, scoped, tag = 'internal scratch']
  %s0 = inlined_call_operand.vmem [shape: bf16[128,128], index: 0, kind: input, shape index: {}]
  %s1 = inlined_call_operand.vmem [shape: bf16[128,128], index: 1, kind: input, shape index: {}]
  %s2 = inlined_call_operand.vmem [shape: f32[128,128], index: 2, kind: output, shape index: {}]
  %s3 = sld [smem:[#allocation0]]
  $region18: #{swin_loss_forward.1} parent=0
    _
  %s5 = ssub.s32 1, %s3
  %s6 = scalar_select 0, %s5, %s3
  // Predicated region
  $region2: #{swin_loss_forward.1} parent=0 // pred_check
    _
  $region3: #{swin_loss_forward.1} parent=0 // pred_check_branch
    %8 = sbr.rel (0) target = $region5
  $region4: #{swin_loss_forward.1} parent=0 // pred_region
    _
  $region5: #{swin_loss_forward.1} parent=0 // pred_fallthru
    _
  // Predicated region
  $region6: #{swin_loss_forward.1} parent=0 // pred_check
    _
  $region7: #{swin_loss_forward.1} parent=0 // pred_check_branch
    %10 = sbr.rel (0) target = $region9
  $region8: #{swin_loss_forward.1} parent=0 // pred_region
    _
  $region9: #{swin_loss_forward.1} parent=0 // pred_fallthru
    _
  %v11 = vld [vmem:[%s0] sm:$0xf]
  %v12 = vld [vmem:[%s0 + $0x4] sm:$0xf]
  %v13 = vld [vmem:[%s0 + $0x8] sm:$0xf]
  %v14 = vld [vmem:[%s0 + $0xc] sm:$0xf]
  %v15 = vld [vmem:[%s0 + $0x10] sm:$0xf]
  %v16 = vld [vmem:[%s0 + $0x14] sm:$0xf]
  %v17 = vld [vmem:[%s0 + $0x18] sm:$0xf]
  %v18 = vld [vmem:[%s0 + $0x1c] sm:$0xf]
  %v19 = vld [vmem:[%s0 + $0x20] sm:$0xf]
  %v20 = vld [vmem:[%s0 + $0x24] sm:$0xf]
  %v21 = vld [vmem:[%s0 + $0x28] sm:$0xf]
  %v22 = vld [vmem:[%s0 + $0x2c] sm:$0xf]
  %v23 = vld [vmem:[%s0 + $0x30] sm:$0xf]
  %v24 = vld [vmem:[%s0 + $0x34] sm:$0xf]
  %v25 = vld [vmem:[%s0 + $0x38] sm:$0xf]
  %v26 = vld [vmem:[%s0 + $0x3c] sm:$0xf]
  %v27 = vld [vmem:[%s1] sm:$0xf]
  %v28 = vld [vmem:[%s1 + $0x4] sm:$0xf]
  %v29 = vld [vmem:[%s1 + $0x8] sm:$0xf]
  %v30 = vld [vmem:[%s1 + $0xc] sm:$0xf]
  %v31 = vld [vmem:[%s1 + $0x10] sm:$0xf]
  %v32 = vld [vmem:[%s1 + $0x14] sm:$0xf]
  %v33 = vld [vmem:[%s1 + $0x18] sm:$0xf]
  %v34 = vld [vmem:[%s1 + $0x1c] sm:$0xf]
  %v35 = vld [vmem:[%s1 + $0x20] sm:$0xf]
  %v36 = vld [vmem:[%s1 + $0x24] sm:$0xf]
  %v37 = vld [vmem:[%s1 + $0x28] sm:$0xf]
  %v38 = vld [vmem:[%s1 + $0x2c] sm:$0xf]
  %v39 = vld [vmem:[%s1 + $0x30] sm:$0xf]
  %v40 = vld [vmem:[%s1 + $0x34] sm:$0xf]
  %v41 = vld [vmem:[%s1 + $0x38] sm:$0xf]
  %v42 = vld [vmem:[%s1 + $0x3c] sm:$0xf]
  %v59 = vunpack.c.l.b16 %v11
  %v60 = vunpack.c.l.b16 %v12
  %v61 = vunpack.c.l.b16 %v13
  %v62 = vunpack.c.l.b16 %v14
  %v63 = vunpack.c.l.b16 %v15
  %v64 = vunpack.c.l.b16 %v16
  %v65 = vunpack.c.l.b16 %v17
  %v66 = vunpack.c.l.b16 %v18
  %v67 = vunpack.c.l.b16 %v19
  %v68 = vunpack.c.l.b16 %v20
  %v69 = vunpack.c.l.b16 %v21
  %v70 = vunpack.c.l.b16 %v22
  %v71 = vunpack.c.l.b16 %v23
  %v72 = vunpack.c.l.b16 %v24
  %v73 = vunpack.c.l.b16 %v25
  %v74 = vunpack.c.l.b16 %v26
  %v75 = vpack.c.b16 %v60, %v59
  %v76 = vpack.c.b16 %v62, %v61
  %v77 = vpack.c.b16 %v64, %v63
  %v78 = vpack.c.b16 %v66, %v65
  %v79 = vpack.c.b16 %v68, %v67
  %v80 = vpack.c.b16 %v70, %v69
  %v81 = vpack.c.b16 %v72, %v71
  %v82 = vpack.c.b16 %v74, %v73
  %v107 = vunpack.c.l.b16 %v27
  %v108 = vunpack.c.l.b16 %v28
  %v109 = vunpack.c.l.b16 %v29
  %v110 = vunpack.c.l.b16 %v30
  %v111 = vunpack.c.l.b16 %v31
  %v112 = vunpack.c.l.b16 %v32
  %v113 = vunpack.c.l.b16 %v33
  %v114 = vunpack.c.l.b16 %v34
  %v115 = vunpack.c.l.b16 %v35
  %v116 = vunpack.c.l.b16 %v36
  %v117 = vunpack.c.l.b16 %v37
  %v118 = vunpack.c.l.b16 %v38
  %v119 = vunpack.c.l.b16 %v39
  %v120 = vunpack.c.l.b16 %v40
  %v121 = vunpack.c.l.b16 %v41
  %v122 = vunpack.c.l.b16 %v42
  %v123 = vpack.c.b16 %v108, %v107
  %v124 = vpack.c.b16 %v110, %v109
  %v125 = vpack.c.b16 %v112, %v111
  %v126 = vpack.c.b16 %v114, %v113
  %v127 = vpack.c.b16 %v116, %v115
  %v128 = vpack.c.b16 %v118, %v117
  %v129 = vpack.c.b16 %v120, %v119
  %v130 = vpack.c.b16 %v122, %v121
  %139 = vmatpush.bf16.xpose.msra.mxu0 %v130
  %140 = vmatpush.bf16.xpose.msra.mxu0 %v129
  %141 = vmatpush.bf16.xpose.msra.mxu0 %v128
  %142 = vmatpush.bf16.xpose.msra.mxu0 %v127
  %143 = vmatpush.bf16.xpose.msra.mxu0 %v126
  %144 = vmatpush.bf16.xpose.msra.mxu0 %v125
  %145 = vmatpush.bf16.xpose.msra.mxu0 %v124
  %146 = vmatpush.bf16.xpose.msra.mxu0 %v123
  %147 = vmatmul.bf16.gmra.mxu0 %v75
  %v148 = vpop.f32.mrf.mxu0
  %v149 = vadd.f32 0.0, %v148
  %v150 = vpop.f32.mrf.mxu0
  %v151 = vadd.f32 0.0, %v150
  %152 = vmatmul.bf16.gmra.mxu0 %v76
  %v153 = vpop.f32.mrf.mxu0
  %v154 = vadd.f32 0.0, %v153
  %v155 = vpop.f32.mrf.mxu0
  %v156 = vadd.f32 0.0, %v155
  %157 = vmatmul.bf16.gmra.mxu0 %v77
  %v158 = vpop.f32.mrf.mxu0
  %v159 = vadd.f32 0.0, %v158
  %v160 = vpop.f32.mrf.mxu0
  %v161 = vadd.f32 0.0, %v160
  %162 = vmatmul.bf16.gmra.mxu0 %v78
  %v163 = vpop.f32.mrf.mxu0
  %v164 = vadd.f32 0.0, %v163
  %v165 = vpop.f32.mrf.mxu0
  %v166 = vadd.f32 0.0, %v165
  %167 = vmatmul.bf16.gmra.mxu0 %v79
  %v168 = vpop.f32.mrf.mxu0
  %v169 = vadd.f32 0.0, %v168
  %v170 = vpop.f32.mrf.mxu0
  %v171 = vadd.f32 0.0, %v170
  %172 = vmatmul.bf16.gmra.mxu0 %v80
  %v173 = vpop.f32.mrf.mxu0
  %v174 = vadd.f32 0.0, %v173
  %v175 = vpop.f32.mrf.mxu0
  %v176 = vadd.f32 0.0, %v175
  %177 = vmatmul.bf16.gmra.mxu0 %v81
  %v178 = vpop.f32.mrf.mxu0
  %v179 = vadd.f32 0.0, %v178
  %v180 = vpop.f32.mrf.mxu0
  %v181 = vadd.f32 0.0, %v180
  %182 = vmatmul.bf16.gmra.mxu0 %v82
  %v183 = vpop.f32.mrf.mxu0
  %v184 = vadd.f32 0.0, %v183
  %v185 = vpop.f32.mrf.mxu0
  %v186 = vadd.f32 0.0, %v185
  %187 = vdwg.mxu0
  %188 = vst [vmem:[%s2] sm:$0xff] %v149
  %189 = vst [vmem:[%s2 + $0x8] sm:$0xff] %v151
  %190 = vst [vmem:[%s2 + $0x10] sm:$0xff] %v154
  %191 = vst [vmem:[%s2 + $0x18] sm:$0xff] %v156
  %192 = vst [vmem:[%s2 + $0x20] sm:$0xff] %v159
  %193 = vst [vmem:[%s2 + $0x28] sm:$0xff] %v161
  %194 = vst [vmem:[%s2 + $0x30] sm:$0xff] %v164
  %195 = vst [vmem:[%s2 + $0x38] sm:$0xff] %v166
  %196 = vst [vmem:[%s2 + $0x40] sm:$0xff] %v169
  %197 = vst [vmem:[%s2 + $0x48] sm:$0xff] %v171
  %198 = vst [vmem:[%s2 + $0x50] sm:$0xff] %v174
  %199 = vst [vmem:[%s2 + $0x58] sm:$0xff] %v176
  %200 = vst [vmem:[%s2 + $0x60] sm:$0xff] %v179
  %201 = vst [vmem:[%s2 + $0x68] sm:$0xff] %v181
  %202 = vst [vmem:[%s2 + $0x70] sm:$0xff] %v184
  %203 = vst [vmem:[%s2 + $0x78] sm:$0xff] %v186
  // Predicated region
  $region10: #{swin_loss_forward.1} parent=0 // pred_check
    _
  $region11: #{swin_loss_forward.1} parent=0 // pred_check_branch
    %205 = sbr.rel (0) target = $region13
  $region12: #{swin_loss_forward.1} parent=0 // pred_region
    _
  $region13: #{swin_loss_forward.1} parent=0 // pred_fallthru
    _
  // Predicated region
  $region14: #{swin_loss_forward.1} parent=0 // pred_check
    _
  $region15: #{swin_loss_forward.1} parent=0 // pred_check_branch
    %207 = sbr.rel (0) target = $region17
  $region16: #{swin_loss_forward.1} parent=0 // pred_region
    _
  $region17: #{swin_loss_forward.1} parent=0 // pred_fallthru
    _

</llo_original>
